<compile_context>
chip_gen: v6e
topology: v6e:2x2x1
jax: 0.10.0
libtpu: 0.0.40
codegen_flags: <defaults>
</compile_context>

<pallas_src>
import jax
import jax.numpy as jnp
import numpy as np
from jax.experimental import pallas as pl
from jax.experimental.pallas import tpu as pltpu

HIDDEN_SIZE = 32   # small synthetic hidden size
GATE_DROP = 0.1    # unused at inference (identity)


def _round_up(x, m):
    return ((x + m - 1) // m) * m


def _cdiv(a, b):
    return -(-a // b)


def _make_gate_kernel(hidden, ps):
    """hidden = H, ps = logical rows packed per physical 128-lane row."""
    in_w = ps * hidden          # packed input row width (128 for H=32)

    def kernel(s_ref, b_ref, wa_ref, wb_ref, sel_ref, bias_ref, out_ref):
        # s_ref/b_ref: (TM, in_w)   packed rows, ps logical rows per slab
        # wa_ref/wb_ref: (in_w, 2*ps) block-diagonal gate weights
        # sel_ref: (2*ps, 2*in_w)   0/1 expansion: gate value -> its H lanes
        # bias_ref: (1, 2*ps)       [ba]*ps + [bb]*ps
        # out_ref: (TM, 2*in_w)     packed output rows (interleaved layout)
        s = s_ref[...].astype(jnp.float32)
        b = b_ref[...].astype(jnp.float32)

        # Both gate logits for every packed logical row (tiny N=2*ps matmuls).
        z = (jnp.dot(s, wa_ref[...], preferred_element_type=jnp.float32)
             + jnp.dot(b, wb_ref[...], preferred_element_type=jnp.float32)
             + bias_ref[...])
        g = jax.nn.sigmoid(z)                                    # (TM, 2*ps)

        # Broadcast each gate value across its H lanes (K=2*ps 0/1 matmul;
        # MXU is otherwise idle in this mem-bound kernel).
        g_lanes = jnp.dot(g, sel_ref[...],
                          preferred_element_type=jnp.float32)    # (TM, 2*in_w)
        gated_s = g_lanes[:, :in_w] * s                          # (TM, in_w)
        gated_b = g_lanes[:, in_w:] * b                          # (TM, in_w)

        # Scatter the H-wide chunks into the interleaved packed output layout
        # [gaS_k, gbB_k, gaS_{k+1}, gbB_{k+1}, ...] with static slice stores.
        for j in range(ps):
            out_ref[:, 2 * hidden * j: 2 * hidden * j + hidden] = (
                gated_s[:, hidden * j: hidden * (j + 1)].astype(out_ref.dtype))
            out_ref[:, 2 * hidden * j + hidden: 2 * hidden * (j + 1)] = (
                gated_b[:, hidden * j: hidden * (j + 1)].astype(out_ref.dtype))

    return kernel


def gate_forward(split_info, bu_info, wa, ba, wb, bb, *, tm=4096):
    """split_info, bu_info: (..., H). Returns (..., 2H)."""
    orig_shape = split_info.shape
    H = orig_shape[-1]
    dtype = split_info.dtype

    s2 = split_info.reshape(-1, H)
    b2 = bu_info.reshape(-1, H)
    N = s2.shape[0]

    # Lane packing: put PS logical rows side by side so the inputs are full
    # 128-lane slabs and the output is a 256-lane slab (falls back to PS=1,
    # lane-sparse but correct, for awkward H).
    PS = 128 // H if (H <= 128 and 128 % H == 0) else 1
    in_w = PS * H
    out_w = 2 * in_w

    # Row padding only when needed (N not a multiple of 8*PS); aligned inputs
    # take a zero-copy path (reshapes of contiguous arrays are free).
    R = _cdiv(max(N, 1), PS)
    R_pad = _round_up(R, 8)
    pad_rows = R_pad * PS - N
    if pad_rows:
        zpad = jnp.zeros((pad_rows, H), dtype)
        s2 = jnp.concatenate([s2, zpad], axis=0)
        b2 = jnp.concatenate([b2, zpad], axis=0)
    s_pk = s2.reshape(R_pad, in_w)
    b_pk = b2.reshape(R_pad, in_w)

    # Row tile: big (amortize per-step pipeline overhead) but capped at
    # ceil(R_pad/2) so there are always >= 2 grid steps for v7x's two cores.
    tm = max(8, _round_up(tm, 8))
    tm_eff = min(tm, _round_up(_cdiv(R_pad, 2), 8))
    grid_steps = _cdiv(R_pad, tm_eff)

    # Constant 0/1 patterns built host-side with numpy; runtime weights are
    # multiplied in with a couple of cheap broadcasts.
    mask_a = np.zeros((in_w, 2 * PS), np.float32)
    mask_b = np.zeros((in_w, 2 * PS), np.float32)
    sel_np = np.zeros((2 * PS, out_w), np.float32)
    for j in range(PS):
        mask_a[j * H:(j + 1) * H, j] = 1.0
        mask_b[j * H:(j + 1) * H, PS + j] = 1.0
        sel_np[j, j * H:(j + 1) * H] = 1.0
        sel_np[PS + j, in_w + j * H: in_w + (j + 1) * H] = 1.0

    wa_col = jnp.tile(wa.reshape(H).astype(jnp.float32), PS)[:, None]
    wb_col = jnp.tile(wb.reshape(H).astype(jnp.float32), PS)[:, None]
    wa_pat = jnp.asarray(mask_a) * wa_col                    # (in_w, 2*PS)
    wb_pat = jnp.asarray(mask_b) * wb_col                    # (in_w, 2*PS)
    sel = jnp.asarray(sel_np)                                # (2*PS, out_w)
    bias = jnp.concatenate(
        [jnp.broadcast_to(ba.reshape(1, 1).astype(jnp.float32), (1, PS)),
         jnp.broadcast_to(bb.reshape(1, 1).astype(jnp.float32), (1, PS))],
        axis=1)                                              # (1, 2*PS)

    kernel = _make_gate_kernel(H, PS)

    out_pk = pl.pallas_call(
        kernel,
        out_shape=jax.ShapeDtypeStruct((R_pad, out_w), dtype),
        grid_spec=pltpu.PrefetchScalarGridSpec(
            num_scalar_prefetch=0,
            grid=(grid_steps,),
            in_specs=[
                pl.BlockSpec((tm_eff, in_w), lambda i: (i, 0)),   # packed split
                pl.BlockSpec((tm_eff, in_w), lambda i: (i, 0)),   # packed bu
                pl.BlockSpec((in_w, 2 * PS), lambda i: (0, 0)),   # wa pattern
                pl.BlockSpec((in_w, 2 * PS), lambda i: (0, 0)),   # wb pattern
                pl.BlockSpec((2 * PS, out_w), lambda i: (0, 0)),  # expansion
                pl.BlockSpec((1, 2 * PS), lambda i: (0, 0)),      # bias
            ],
            out_specs=pl.BlockSpec((tm_eff, out_w), lambda i: (i, 0)),
        ),
        compiler_params=pltpu.CompilerParams(
            dimension_semantics=("parallel",),
            vmem_limit_bytes=48 * 1024 * 1024),
    )(s_pk, b_pk, wa_pat, wb_pat, sel, bias)

    out = out_pk.reshape(R_pad * PS, 2 * H)[:N]
    return out.reshape(*orig_shape[:-1], 2 * H)


def gate_reference(split_info, bu_info, wa, ba, wb, bb):
    ga = jax.nn.sigmoid(split_info @ wa.T + ba)
    gb = jax.nn.sigmoid(bu_info @ wb.T + bb)
    return jnp.concatenate([ga * split_info, gb * bu_info], axis=-1)


if __name__ == "__main__":
    key = jax.random.PRNGKey(0)
    k1, k2, k3, k4, k5, k6 = jax.random.split(key, 6)

    batch, seq, H = 2, 8, HIDDEN_SIZE

    split_info = jax.random.normal(k1, (batch, seq, H), dtype=jnp.float32)
    bu_info = jax.random.normal(k2, (batch, seq, H), dtype=jnp.float32)

    # Deterministic parameter init (shapes from nn.Linear(HIDDEN_SIZE, 1)).
    bound = 1.0 / (H ** 0.5)
    wa = jax.random.uniform(k3, (1, H), jnp.float32, -bound, bound)
    ba = jax.random.uniform(k4, (1,), jnp.float32, -bound, bound)
    wb = jax.random.uniform(k5, (1, H), jnp.float32, -bound, bound)
    bb = jax.random.uniform(k6, (1,), jnp.float32, -bound, bound)

    out = gate_forward(split_info, bu_info, wa, ba, wb, bb)
    out = jax.block_until_ready(out)

    ref = gate_reference(split_info, bu_info, wa, ba, wb, bb)
    assert out.shape == (batch, seq, 2 * H)
    assert jnp.allclose(out, ref, atol=1e-5, rtol=1e-5), "mismatch vs reference"

    # Ragged row count exercises the padding path (N=15 is not divisible by
    # the lane-pack factor or the sublane granularity).
    s_r = jax.random.normal(k1, (3, 5, H), dtype=jnp.float32)
    b_r = jax.random.normal(k2, (3, 5, H), dtype=jnp.float32)
    out_r = jax.block_until_ready(gate_forward(s_r, b_r, wa, ba, wb, bb))
    ref_r = gate_reference(s_r, b_r, wa, ba, wb, bb)
    assert out_r.shape == (3, 5, 2 * H)
    assert jnp.allclose(out_r, ref_r, atol=1e-5, rtol=1e-5), "ragged mismatch"

    print("KERNEL_OK")
</pallas_src>

<mosaic_0001>
module attributes {stable_mosaic.version = 11 : i64} {
  func.func @kernel(%arg0: i32, %arg1: memref<8x128xf32, #tpu.memory_space<vmem>>, %arg2: memref<8x128xf32, #tpu.memory_space<vmem>>, %arg3: memref<128x8xf32, #tpu.memory_space<vmem>>, %arg4: memref<128x8xf32, #tpu.memory_space<vmem>>, %arg5: memref<8x256xf32, #tpu.memory_space<vmem>>, %arg6: memref<1x8xf32, #tpu.memory_space<vmem>>, %arg7: memref<8x256xf32, #tpu.memory_space<vmem>>) attributes {dimension_semantics = [#tpu.dimension_semantics<parallel>], iteration_bounds = array<i64: 1>, scalar_prefetch = 0 : i64, scratch_operands = 0 : i64, tpu.core_type = #tpu.core_type<tc>, window_params = [{transform_indices = @transform_0, window_bounds = array<i64: 8, 128>}, {transform_indices = @transform_1, window_bounds = array<i64: 8, 128>}, {pipeline_mode = #tpu.pipeline_mode<synchronous>, transform_indices = @transform_2, window_bounds = array<i64: 128, 8>}, {pipeline_mode = #tpu.pipeline_mode<synchronous>, transform_indices = @transform_3, window_bounds = array<i64: 128, 8>}, {pipeline_mode = #tpu.pipeline_mode<synchronous>, transform_indices = @transform_4, window_bounds = array<i64: 8, 256>}, {pipeline_mode = #tpu.pipeline_mode<synchronous>, transform_indices = @transform_5, window_bounds = array<i64: 1, 8>}, {transform_indices = @transform_6, window_bounds = array<i64: 8, 256>}]} {
    %c0 = arith.constant 0 : index
    %c0_0 = arith.constant 0 : index
    %0 = vector.load %arg1[%c0, %c0_0] : memref<8x128xf32, #tpu.memory_space<vmem>>, vector<8x128xf32>
    %c0_1 = arith.constant 0 : index
    %c0_2 = arith.constant 0 : index
    %1 = vector.load %arg2[%c0_1, %c0_2] : memref<8x128xf32, #tpu.memory_space<vmem>>, vector<8x128xf32>
    %c0_3 = arith.constant 0 : index
    %c0_4 = arith.constant 0 : index
    %2 = vector.load %arg3[%c0_3, %c0_4] : memref<128x8xf32, #tpu.memory_space<vmem>>, vector<128x8xf32>
    %cst = arith.constant dense<0.000000e+00> : vector<8x8xf32>
    %3 = tpu.matmul %0, %2, %cst {dimension_numbers = #tpu.dot_dimension_numbers<[1], [0], [0], [1], [0, 0, 1, 1], [], []>} : vector<8x128xf32>, vector<128x8xf32>, vector<8x8xf32> -> vector<8x8xf32>
    %c0_5 = arith.constant 0 : index
    %c0_6 = arith.constant 0 : index
    %4 = vector.load %arg4[%c0_5, %c0_6] : memref<128x8xf32, #tpu.memory_space<vmem>>, vector<128x8xf32>
    %cst_7 = arith.constant dense<0.000000e+00> : vector<8x8xf32>
    %5 = tpu.matmul %1, %4, %cst_7 {dimension_numbers = #tpu.dot_dimension_numbers<[1], [0], [0], [1], [0, 0, 1, 1], [], []>} : vector<8x128xf32>, vector<128x8xf32>, vector<8x8xf32> -> vector<8x8xf32>
    %6 = arith.addf %3, %5 : vector<8x8xf32>
    %c0_8 = arith.constant 0 : index
    %c0_9 = arith.constant 0 : index
    %7 = vector.load %arg6[%c0_8, %c0_9] : memref<1x8xf32, #tpu.memory_space<vmem>>, vector<1x8xf32>
    %8 = vector.broadcast %7 : vector<1x8xf32> to vector<8x8xf32>
    %9 = arith.addf %6, %8 : vector<8x8xf32>
    %10 = arith.negf %9 : vector<8x8xf32>
    %11 = math.exp %10 : vector<8x8xf32>
    %cst_10 = arith.constant 1.000000e+00 : f32
    %12 = vector.broadcast %cst_10 : f32 to vector<8x8xf32>
    %13 = arith.addf %12, %11 : vector<8x8xf32>
    %14 = arith.divf %12, %13 : vector<8x8xf32>
    %c0_11 = arith.constant 0 : index
    %c0_12 = arith.constant 0 : index
    %15 = vector.load %arg5[%c0_11, %c0_12] : memref<8x256xf32, #tpu.memory_space<vmem>>, vector<8x256xf32>
    %cst_13 = arith.constant dense<0.000000e+00> : vector<8x256xf32>
    %16 = tpu.matmul %14, %15, %cst_13 {dimension_numbers = #tpu.dot_dimension_numbers<[1], [0], [0], [1], [0, 0, 1, 1], [], []>} : vector<8x8xf32>, vector<8x256xf32>, vector<8x256xf32> -> vector<8x256xf32>
    %17 = vector.extract_strided_slice %16 {offsets = [0, 0], sizes = [8, 128], strides = [1, 1]} : vector<8x256xf32> to vector<8x128xf32>
    %18 = arith.mulf %17, %0 : vector<8x128xf32>
    %19 = vector.extract_strided_slice %16 {offsets = [0, 128], sizes = [8, 128], strides = [1, 1]} : vector<8x256xf32> to vector<8x128xf32>
    %20 = arith.mulf %19, %1 : vector<8x128xf32>
    %21 = vector.extract_strided_slice %18 {offsets = [0, 0], sizes = [8, 32], strides = [1, 1]} : vector<8x128xf32> to vector<8x32xf32>
    %c0_14 = arith.constant 0 : index
    %c0_15 = arith.constant 0 : index
    %22 = vector.load %arg7[%c0_14, %c0_15] : memref<8x256xf32, #tpu.memory_space<vmem>>, vector<8x32xf32>
    tpu.vector_store %arg7[%c0_14, %c0_15], %21 {strides = array<i32>} : memref<8x256xf32, #tpu.memory_space<vmem>>, vector<8x32xf32>,
    %23 = vector.extract_strided_slice %20 {offsets = [0, 0], sizes = [8, 32], strides = [1, 1]} : vector<8x128xf32> to vector<8x32xf32>
    %c0_16 = arith.constant 0 : index
    %c32 = arith.constant 32 : index
    %24 = vector.load %arg7[%c0_16, %c32] : memref<8x256xf32, #tpu.memory_space<vmem>>, vector<8x32xf32>
    tpu.vector_store %arg7[%c0_16, %c32], %23 {strides = array<i32>} : memref<8x256xf32, #tpu.memory_space<vmem>>, vector<8x32xf32>,
    %25 = vector.extract_strided_slice %18 {offsets = [0, 32], sizes = [8, 32], strides = [1, 1]} : vector<8x128xf32> to vector<8x32xf32>
    %c0_17 = arith.constant 0 : index
    %c64 = arith.constant 64 : index
    %26 = vector.load %arg7[%c0_17, %c64] : memref<8x256xf32, #tpu.memory_space<vmem>>, vector<8x32xf32>
    tpu.vector_store %arg7[%c0_17, %c64], %25 {strides = array<i32>} : memref<8x256xf32, #tpu.memory_space<vmem>>, vector<8x32xf32>,
    %27 = vector.extract_strided_slice %20 {offsets = [0, 32], sizes = [8, 32], strides = [1, 1]} : vector<8x128xf32> to vector<8x32xf32>
    %c0_18 = arith.constant 0 : index
    %c96 = arith.constant 96 : index
    %28 = vector.load %arg7[%c0_18, %c96] : memref<8x256xf32, #tpu.memory_space<vmem>>, vector<8x32xf32>
    tpu.vector_store %arg7[%c0_18, %c96], %27 {strides = array<i32>} : memref<8x256xf32, #tpu.memory_space<vmem>>, vector<8x32xf32>,
    %29 = vector.extract_strided_slice %18 {offsets = [0, 64], sizes = [8, 32], strides = [1, 1]} : vector<8x128xf32> to vector<8x32xf32>
    %c0_19 = arith.constant 0 : index
    %c128 = arith.constant 128 : index
    %30 = vector.load %arg7[%c0_19, %c128] : memref<8x256xf32, #tpu.memory_space<vmem>>, vector<8x32xf32>
    tpu.vector_store %arg7[%c0_19, %c128], %29 {strides = array<i32>} : memref<8x256xf32, #tpu.memory_space<vmem>>, vector<8x32xf32>,
    %31 = vector.extract_strided_slice %20 {offsets = [0, 64], sizes = [8, 32], strides = [1, 1]} : vector<8x128xf32> to vector<8x32xf32>
    %c0_20 = arith.constant 0 : index
    %c160 = arith.constant 160 : index
    %32 = vector.load %arg7[%c0_20, %c160] : memref<8x256xf32, #tpu.memory_space<vmem>>, vector<8x32xf32>
    tpu.vector_store %arg7[%c0_20, %c160], %31 {strides = array<i32>} : memref<8x256xf32, #tpu.memory_space<vmem>>, vector<8x32xf32>,
    %33 = vector.extract_strided_slice %18 {offsets = [0, 96], sizes = [8, 32], strides = [1, 1]} : vector<8x128xf32> to vector<8x32xf32>
    %c0_21 = arith.constant 0 : index
    %c192 = arith.constant 192 : index
    %34 = vector.load %arg7[%c0_21, %c192] : memref<8x256xf32, #tpu.memory_space<vmem>>, vector<8x32xf32>
    tpu.vector_store %arg7[%c0_21, %c192], %33 {strides = array<i32>} : memref<8x256xf32, #tpu.memory_space<vmem>>, vector<8x32xf32>,
    %35 = vector.extract_strided_slice %20 {offsets = [0, 96], sizes = [8, 32], strides = [1, 1]} : vector<8x128xf32> to vector<8x32xf32>
    %c0_22 = arith.constant 0 : index
    %c224 = arith.constant 224 : index
    %36 = vector.load %arg7[%c0_22, %c224] : memref<8x256xf32, #tpu.memory_space<vmem>>, vector<8x32xf32>
    tpu.vector_store %arg7[%c0_22, %c224], %35 {strides = array<i32>} : memref<8x256xf32, #tpu.memory_space<vmem>>, vector<8x32xf32>,
    return
  }
  func.func @transform_0(%arg0: i32) -> (i32, i32) {
    %c0_i32 = arith.constant 0 : i32
    %c0_i32_0 = arith.constant 0 : i32
    return %arg0, %c0_i32 : i32, i32
  }
  func.func @transform_1(%arg0: i32) -> (i32, i32) {
    %c0_i32 = arith.constant 0 : i32
    %c0_i32_0 = arith.constant 0 : i32
    return %arg0, %c0_i32 : i32, i32
  }
  func.func @transform_2(%arg0: i32) -> (i32, i32) {
    %c0_i32 = arith.constant 0 : i32
    %c0_i32_0 = arith.constant 0 : i32
    %c0_i32_1 = arith.constant 0 : i32
    return %c0_i32, %c0_i32_0 : i32, i32
  }
  func.func @transform_3(%arg0: i32) -> (i32, i32) {
    %c0_i32 = arith.constant 0 : i32
    %c0_i32_0 = arith.constant 0 : i32
    %c0_i32_1 = arith.constant 0 : i32
    return %c0_i32, %c0_i32_0 : i32, i32
  }
  func.func @transform_4(%arg0: i32) -> (i32, i32) {
    %c0_i32 = arith.constant 0 : i32
    %c0_i32_0 = arith.constant 0 : i32
    %c0_i32_1 = arith.constant 0 : i32
    return %c0_i32, %c0_i32_0 : i32, i32
  }
  func.func @transform_5(%arg0: i32) -> (i32, i32) {
    %c0_i32 = arith.constant 0 : i32
    %c0_i32_0 = arith.constant 0 : i32
    %c0_i32_1 = arith.constant 0 : i32
    return %c0_i32, %c0_i32_0 : i32, i32
  }
  func.func @transform_6(%arg0: i32) -> (i32, i32) {
    %c0_i32 = arith.constant 0 : i32
    %c0_i32_0 = arith.constant 0 : i32
    return %arg0, %c0_i32 : i32, i32
  }
}

</mosaic_0001>

<llo_original>
// kernel: tpu_custom_call.1
$region0: #{tpu_custom_call.1}
  #allocation0 [shape = 'u32[]', space=smem, size = 0x4, offset = 0x4, fixed_abs, tag = 'smem constant byte address 0x4 - core index']
  #allocation1 [shape = 'u32[144,128]{1,0:T(1,128)}', space=vmem, size = 0x12000, scoped, tag = 'internal scratch']
  %s0 = inlined_call_operand.vmem [shape: f32[8,128], index: 0, kind: input, shape index: {}]
  %s1 = inlined_call_operand.vmem [shape: f32[8,128], index: 1, kind: input, shape index: {}]
  %s2 = inlined_call_operand.vmem [shape: f32[128,8], index: 2, kind: input, shape index: {}]
  %s3 = inlined_call_operand.vmem [shape: f32[128,8], index: 3, kind: input, shape index: {}]
  %s4 = inlined_call_operand.vmem [shape: f32[8,256], index: 4, kind: input, shape index: {}]
  %s5 = inlined_call_operand.vmem [shape: f32[1,8], index: 5, kind: input, shape index: {}]
  %s6 = inlined_call_operand.hbm [shape: f32[8,256], index: 6, kind: output, shape index: {}]
  %s7 = sld [smem:[#allocation0]]
  $region34: #{tpu_custom_call.1} parent=0
    _
  %s9 = ssub.s32 1, %s7
  %s10 = scalar_select 0, %s9, %s7
  $region1: #{tpu_custom_call.1} parent=0
    #allocation2 [shape = 'u8[8192]{0}', space=vmem, size = 0x2000, scoped, tag = 'output window, operand 0, single buffered']
    #allocation3 [shape = 's32[1]{0}', space=sflag, size = 0x4, scoped, tag = 'scoped memory for tpu_custom_call.1']
    %11 = vsyncpa [#allocation3], 0
    // Predicated region
    $region2: #{tpu_custom_call.1} parent=1 // pred_check
      _
    $region3: #{tpu_custom_call.1} parent=1 // pred_check_branch
      %13 = sbr.rel (0) target = $region5
    $region4: #{tpu_custom_call.1} parent=1 // pred_region
      _
    $region5: #{tpu_custom_call.1} parent=1 // pred_fallthru
      _
    // Predicated region
    $region6: #{tpu_custom_call.1} parent=1 // pred_check
      _
    $region7: #{tpu_custom_call.1} parent=1 // pred_check_branch
      %15 = sbr.rel (0) target = $region9
    $region8: #{tpu_custom_call.1} parent=1 // pred_region
      _
    $region9: #{tpu_custom_call.1} parent=1 // pred_fallthru
      _
    // Predicated region
    $region10: #{tpu_custom_call.1} parent=1 // pred_check
      _
    $region11: #{tpu_custom_call.1} parent=1 // pred_check_branch
      %17 = sbr.rel (0) target = $region13
    $region12: #{tpu_custom_call.1} parent=1 // pred_region
      _
    $region13: #{tpu_custom_call.1} parent=1 // pred_fallthru
      _
    // Predicated region
    $region14: #{tpu_custom_call.1} parent=1 // pred_check
      _
    $region15: #{tpu_custom_call.1} parent=1 // pred_check_branch
      %19 = sbr.rel (0) target = $region17
    $region16: #{tpu_custom_call.1} parent=1 // pred_region
      _
    $region17: #{tpu_custom_call.1} parent=1 // pred_fallthru
      _
    // Predicated region
    $region18: #{tpu_custom_call.1} parent=1 // pred_check
      _
    $region19: #{tpu_custom_call.1} parent=1 // pred_check_branch
      %21 = sbr.rel (0) target = $region21
    $region20: #{tpu_custom_call.1} parent=1 // pred_region
      _
    $region21: #{tpu_custom_call.1} parent=1 // pred_fallthru
      _
    // Predicated region
    $region22: #{tpu_custom_call.1} parent=1 // pred_check
      _
    $region23: #{tpu_custom_call.1} parent=1 // pred_check_branch
      %23 = sbr.rel (0) target = $region25
    $region24: #{tpu_custom_call.1} parent=1 // pred_region
      _
    $region25: #{tpu_custom_call.1} parent=1 // pred_fallthru
      _
    %v24 = vld [vmem:[%s0] sm:$0xff]
    %v25 = vld [vmem:[%s1] sm:$0xff]
    %v26 = vld [vmem:[%s2] sm:$0xff]
    %v27 = vld [vmem:[%s2 + $0x8] sm:$0xff]
    %v28 = vld [vmem:[%s2 + $0x10] sm:$0xff]
    %v29 = vld [vmem:[%s2 + $0x18] sm:$0xff]
    %v30 = vld [vmem:[%s2 + $0x20] sm:$0xff]
    %v31 = vld [vmem:[%s2 + $0x28] sm:$0xff]
    %v32 = vld [vmem:[%s2 + $0x30] sm:$0xff]
    %v33 = vld [vmem:[%s2 + $0x38] sm:$0xff]
    %v34 = vld [vmem:[%s2 + $0x40] sm:$0xff]
    %v35 = vld [vmem:[%s2 + $0x48] sm:$0xff]
    %v36 = vld [vmem:[%s2 + $0x50] sm:$0xff]
    %v37 = vld [vmem:[%s2 + $0x58] sm:$0xff]
    %v38 = vld [vmem:[%s2 + $0x60] sm:$0xff]
    %v39 = vld [vmem:[%s2 + $0x68] sm:$0xff]
    %v40 = vld [vmem:[%s2 + $0x70] sm:$0xff]
    %v41 = vld [vmem:[%s2 + $0x78] sm:$0xff]
    %v42 = vld [vmem:[%s3] sm:$0xff]
    %v43 = vld [vmem:[%s3 + $0x8] sm:$0xff]
    %v44 = vld [vmem:[%s3 + $0x10] sm:$0xff]
    %v45 = vld [vmem:[%s3 + $0x18] sm:$0xff]
    %v46 = vld [vmem:[%s3 + $0x20] sm:$0xff]
    %v47 = vld [vmem:[%s3 + $0x28] sm:$0xff]
    %v48 = vld [vmem:[%s3 + $0x30] sm:$0xff]
    %v49 = vld [vmem:[%s3 + $0x38] sm:$0xff]
    %v50 = vld [vmem:[%s3 + $0x40] sm:$0xff]
    %v51 = vld [vmem:[%s3 + $0x48] sm:$0xff]
    %v52 = vld [vmem:[%s3 + $0x50] sm:$0xff]
    %v53 = vld [vmem:[%s3 + $0x58] sm:$0xff]
    %v54 = vld [vmem:[%s3 + $0x60] sm:$0xff]
    %v55 = vld [vmem:[%s3 + $0x68] sm:$0xff]
    %v56 = vld [vmem:[%s3 + $0x70] sm:$0xff]
    %v57 = vld [vmem:[%s3 + $0x78] sm:$0xff]
    %58 = vmatprep.subr.mxu0 0.0
    %59 = vmatpush1.msra.mxu0 %v57
    %60 = vmatprep.subr.mxu0 0.0
    %61 = vmatpush1.msra.mxu0 %v56
    %62 = vmatprep.subr.mxu0 0.0
    %63 = vmatpush1.msra.mxu0 %v55
    %64 = vmatprep.subr.mxu0 0.0
    %65 = vmatpush1.msra.mxu0 %v54
    %66 = vmatprep.subr.mxu0 0.0
    %67 = vmatpush1.msra.mxu0 %v53
    %68 = vmatprep.subr.mxu0 0.0
    %69 = vmatpush1.msra.mxu0 %v52
    %70 = vmatprep.subr.mxu0 0.0
    %71 = vmatpush1.msra.mxu0 %v51
    %72 = vmatprep.subr.mxu0 0.0
    %73 = vmatpush1.msra.mxu0 %v50
    %74 = vmatprep.subr.mxu0 0.0
    %75 = vmatpush1.msra.mxu0 %v49
    %76 = vmatprep.subr.mxu0 0.0
    %77 = vmatpush1.msra.mxu0 %v48
    %78 = vmatprep.subr.mxu0 0.0
    %79 = vmatpush1.msra.mxu0 %v47
    %80 = vmatprep.subr.mxu0 0.0
    %81 = vmatpush1.msra.mxu0 %v46
    %82 = vmatprep.subr.mxu0 0.0
    %83 = vmatpush1.msra.mxu0 %v45
    %84 = vmatprep.subr.mxu0 0.0
    %85 = vmatpush1.msra.mxu0 %v44
    %86 = vmatprep.subr.mxu0 0.0
    %87 = vmatpush1.msra.mxu0 %v43
    %88 = vmatprep.subr.mxu0 0.0
    %89 = vmatpush1.msra.mxu0 %v42
    %90 = vmatprep.subr.mxu0 0.0
    %91 = vmatpush2.msra.mxu0 0.0
    %92 = vmatprep.subr.mxu0 0.0
    %93 = vmatpush2.msra.mxu0 0.0
    %94 = vmatprep.subr.mxu0 0.0
    %95 = vmatpush2.msra.mxu0 0.0
    %96 = vmatprep.subr.mxu0 0.0
    %97 = vmatpush2.msra.mxu0 0.0
    %98 = vmatprep.subr.mxu0 0.0
    %99 = vmatpush2.msra.mxu0 0.0
    %100 = vmatprep.subr.mxu0 0.0
    %101 = vmatpush2.msra.mxu0 0.0
    %102 = vmatprep.subr.mxu0 0.0
    %103 = vmatpush2.msra.mxu0 0.0
    %104 = vmatprep.subr.mxu0 0.0
    %105 = vmatpush2.msra.mxu0 0.0
    %106 = vmatprep.subr.mxu0 0.0
    %107 = vmatpush2.msra.mxu0 0.0
    %108 = vmatprep.subr.mxu0 0.0
    %109 = vmatpush2.msra.mxu0 0.0
    %110 = vmatprep.subr.mxu0 0.0
    %111 = vmatpush2.msra.mxu0 0.0
    %112 = vmatprep.subr.mxu0 0.0
    %113 = vmatpush2.msra.mxu0 0.0
    %114 = vmatprep.subr.mxu0 0.0
    %115 = vmatpush2.msra.mxu0 0.0
    %116 = vmatprep.subr.mxu0 0.0
    %117 = vmatpush2.msra.mxu0 0.0
    %118 = vmatprep.subr.mxu0 0.0
    %119 = vmatpush2.msra.mxu0 0.0
    %120 = vmatprep.subr.mxu0 0.0
    %121 = vmatpush2.msra.mxu0 0.0
    %122 = vmatprep.mubr.f32.mxu0 0.0
    %123 = vmatmul.mubr.f32.gmra.mxu0 %v25
    %v124 = vpop.f32.mrf.mxu0
    %v125 = vadd.f32 0.0, %v124
    %v126 = vpop.f32.mrf.mxu0
    %127 = vdwg.mxu0
    %128 = vmatprep.subr.mxu0 0.0
    %129 = vmatpush1.msra.mxu0 %v41
    %130 = vmatprep.subr.mxu0 0.0
    %131 = vmatpush1.msra.mxu0 %v40
    %132 = vmatprep.subr.mxu0 0.0
    %133 = vmatpush1.msra.mxu0 %v39
    %134 = vmatprep.subr.mxu0 0.0
    %135 = vmatpush1.msra.mxu0 %v38
    %136 = vmatprep.subr.mxu0 0.0
    %137 = vmatpush1.msra.mxu0 %v37
    %138 = vmatprep.subr.mxu0 0.0
    %139 = vmatpush1.msra.mxu0 %v36
    %140 = vmatprep.subr.mxu0 0.0
    %141 = vmatpush1.msra.mxu0 %v35
    %142 = vmatprep.subr.mxu0 0.0
    %143 = vmatpush1.msra.mxu0 %v34
    %144 = vmatprep.subr.mxu0 0.0
    %145 = vmatpush1.msra.mxu0 %v33
    %146 = vmatprep.subr.mxu0 0.0
    %147 = vmatpush1.msra.mxu0 %v32
    %148 = vmatprep.subr.mxu0 0.0
    %149 = vmatpush1.msra.mxu0 %v31
    %150 = vmatprep.subr.mxu0 0.0
    %151 = vmatpush1.msra.mxu0 %v30
    %152 = vmatprep.subr.mxu0 0.0
    %153 = vmatpush1.msra.mxu0 %v29
    %154 = vmatprep.subr.mxu0 0.0
    %155 = vmatpush1.msra.mxu0 %v28
    %156 = vmatprep.subr.mxu0 0.0
    %157 = vmatpush1.msra.mxu0 %v27
    %158 = vmatprep.subr.mxu0 0.0
    %159 = vmatpush1.msra.mxu0 %v26
    %160 = vmatprep.subr.mxu0 0.0
    %161 = vmatpush2.msra.mxu0 0.0
    %162 = vmatprep.subr.mxu0 0.0
    %163 = vmatpush2.msra.mxu0 0.0
    %164 = vmatprep.subr.mxu0 0.0
    %165 = vmatpush2.msra.mxu0 0.0
    %166 = vmatprep.subr.mxu0 0.0
    %167 = vmatpush2.msra.mxu0 0.0
    %168 = vmatprep.subr.mxu0 0.0
    %169 = vmatpush2.msra.mxu0 0.0
    %170 = vmatprep.subr.mxu0 0.0
    %171 = vmatpush2.msra.mxu0 0.0
    %172 = vmatprep.subr.mxu0 0.0
    %173 = vmatpush2.msra.mxu0 0.0
    %174 = vmatprep.subr.mxu0 0.0
    %175 = vmatpush2.msra.mxu0 0.0
    %176 = vmatprep.subr.mxu0 0.0
    %177 = vmatpush2.msra.mxu0 0.0
    %178 = vmatprep.subr.mxu0 0.0
    %179 = vmatpush2.msra.mxu0 0.0
    %180 = vmatprep.subr.mxu0 0.0
    %181 = vmatpush2.msra.mxu0 0.0
    %182 = vmatprep.subr.mxu0 0.0
    %183 = vmatpush2.msra.mxu0 0.0
    %184 = vmatprep.subr.mxu0 0.0
    %185 = vmatpush2.msra.mxu0 0.0
    %186 = vmatprep.subr.mxu0 0.0
    %187 = vmatpush2.msra.mxu0 0.0
    %188 = vmatprep.subr.mxu0 0.0
    %189 = vmatpush2.msra.mxu0 0.0
    %190 = vmatprep.subr.mxu0 0.0
    %191 = vmatpush2.msra.mxu0 0.0
    %192 = vmatprep.mubr.f32.mxu0 0.0
    %193 = vmatmul.mubr.f32.gmra.mxu0 %v24
    %v194 = vpop.f32.mrf.mxu0
    %v195 = vadd.f32 %v125, %v194
    %v196 = vpop.f32.mrf.mxu0
    %197 = vdwg.mxu0
    %v198 = vld [vmem:[%s5] sm:$0x1]
    %v200 = vlaneseq
    %v201 = vshrl.u32 %v200, 7
    %v202 = vsub.s32 0, %v201
    %v203 = vrot.slane %v198, %v202
    %v205 = vadd.f32 %v195, %v203
    %v206 = vxor.u32 %v205, 2147483648
    %v207 = vmul.f32 %v206, 1.442695
    %v208 = vpow.pop %v207
    %v209 = vadd.f32 %v208, 1.0
    %v210 = vrcp.pop %v209
    %v211 = vmul.f32 1.0, %v210
    %v212 = vld [vmem:[%s4] sm:$0xff]
    %v213 = vld [vmem:[%s4 + $0x8] sm:$0xff]
    %vm214 = vcmask 64512
    %v216 = vsel %vm214, %v211, 0
    %218 = vmatprep.subr.mxu0 0.0
    %219 = vmatpush1.msra.mxu0 0.0
    %220 = vmatprep.subr.mxu0 0.0
    %221 = vmatpush1.msra.mxu0 0.0
    %222 = vmatprep.subr.mxu0 0.0
    %223 = vmatpush1.msra.mxu0 0.0
    %224 = vmatprep.subr.mxu0 0.0
    %225 = vmatpush1.msra.mxu0 0.0
    %226 = vmatprep.subr.mxu0 0.0
    %227 = vmatpush1.msra.mxu0 0.0
    %228 = vmatprep.subr.mxu0 0.0
    %229 = vmatpush1.msra.mxu0 0.0
    %230 = vmatprep.subr.mxu0 0.0
    %231 = vmatpush1.msra.mxu0 0.0
    %232 = vmatprep.subr.mxu0 0.0
    %233 = vmatpush1.msra.mxu0 0.0
    %234 = vmatprep.subr.mxu0 0.0
    %235 = vmatpush1.msra.mxu0 0.0
    %236 = vmatprep.subr.mxu0 0.0
    %237 = vmatpush1.msra.mxu0 0.0
    %238 = vmatprep.subr.mxu0 0.0
    %239 = vmatpush1.msra.mxu0 0.0
    %240 = vmatprep.subr.mxu0 0.0
    %241 = vmatpush1.msra.mxu0 0.0
    %242 = vmatprep.subr.mxu0 0.0
    %243 = vmatpush1.msra.mxu0 0.0
    %244 = vmatprep.subr.mxu0 0.0
    %245 = vmatpush1.msra.mxu0 0.0
    %246 = vmatprep.subr.mxu0 0.0
    %247 = vmatpush1.msra.mxu0 0.0
    %248 = vmatprep.subr.mxu0 %v213
    %249 = vmatpush1.msra.mxu0 %v212
    %250 = vmatprep.subr.mxu0 0.0
    %251 = vmatpush2.msra.mxu0 0.0
    %252 = vmatprep.subr.mxu0 0.0
    %253 = vmatpush2.msra.mxu0 0.0
    %254 = vmatprep.subr.mxu0 0.0
    %255 = vmatpush2.msra.mxu0 0.0
    %256 = vmatprep.subr.mxu0 0.0
    %257 = vmatpush2.msra.mxu0 0.0
    %258 = vmatprep.subr.mxu0 0.0
    %259 = vmatpush2.msra.mxu0 0.0
    %260 = vmatprep.subr.mxu0 0.0
    %261 = vmatpush2.msra.mxu0 0.0
    %262 = vmatprep.subr.mxu0 0.0
    %263 = vmatpush2.msra.mxu0 0.0
    %264 = vmatprep.subr.mxu0 0.0
    %265 = vmatpush2.msra.mxu0 0.0
    %266 = vmatprep.subr.mxu0 0.0
    %267 = vmatpush2.msra.mxu0 0.0
    %268 = vmatprep.subr.mxu0 0.0
    %269 = vmatpush2.msra.mxu0 0.0
    %270 = vmatprep.subr.mxu0 0.0
    %271 = vmatpush2.msra.mxu0 0.0
    %272 = vmatprep.subr.mxu0 0.0
    %273 = vmatpush2.msra.mxu0 0.0
    %274 = vmatprep.subr.mxu0 0.0
    %275 = vmatpush2.msra.mxu0 0.0
    %276 = vmatprep.subr.mxu0 0.0
    %277 = vmatpush2.msra.mxu0 0.0
    %278 = vmatprep.subr.mxu0 0.0
    %279 = vmatpush2.msra.mxu0 0.0
    %280 = vmatprep.subr.mxu0 0.0
    %281 = vmatpush2.msra.mxu0 0.0
    %282 = vmatprep.mubr.f32.mxu0 0.0
    %283 = vmatmul.mubr.f32.gmra.mxu0 %v216
    %v284 = vpop.f32.mrf.mxu0
    %v285 = vadd.f32 0.0, %v284
    %v286 = vpop.f32.mrf.mxu0
    %v287 = vadd.f32 0.0, %v286
    %288 = vdwg.mxu0
    %v289 = vmul.f32 %v285, %v24
    %v290 = vmul.f32 %v287, %v25
    %vm291 = vcmask 261120
    %292 = vst.msk [vmem:[#allocation2] sm:$0xff] %vm291, %v289
    %294 = vrot.lane.b32.xlu0 %v290, 32
    %v295 = vpop.permute.xlu0 %294
    %vm297 = vcmask 523520
    %298 = vst.msk [vmem:[#allocation2] sm:$0xff] %vm297, %v295
    %300 = vrot.lane.b32.xlu0 %v289, 32
    %v301 = vpop.permute.xlu0 %300
    %vm303 = vcmask 785920
    %304 = vst.msk [vmem:[#allocation2] sm:$0xff] %vm303, %v301
    %305 = vrot.lane.b32.xlu0 %v290, 64
    %v306 = vpop.permute.xlu0 %305
    %vm308 = vcmask 1048320
    %309 = vst.msk [vmem:[#allocation2] sm:$0xff] %vm308, %v306
    %310 = vrot.lane.b32.xlu0 %v289, 64
    %v311 = vpop.permute.xlu0 %310
    %313 = vst.msk [vmem:[#allocation2 + $0x8] sm:$0xff] %vm291, %v311
    %314 = vrot.lane.b32.xlu0 %v290, 96
    %v315 = vpop.permute.xlu0 %314
    %317 = vst.msk [vmem:[#allocation2 + $0x8] sm:$0xff] %vm297, %v315
    %318 = vrot.lane.b32.xlu0 %v289, 96
    %v319 = vpop.permute.xlu0 %318
    %321 = vst.msk [vmem:[#allocation2 + $0x8] sm:$0xff] %vm303, %v319
    %322 = vst.msk [vmem:[#allocation2 + $0x8] sm:$0xff] %vm308, %v290
    // Predicated region
    $region26: #{tpu_custom_call.1} parent=1 // pred_check
      _
    $region27: #{tpu_custom_call.1} parent=1 // pred_check_branch
      %324 = sbr.rel (0) target = $region29
    $region28: #{tpu_custom_call.1} parent=1 // pred_region
      %s326 = ssub.s32 256, 256
      %327 = vsyncadd [#allocation3], %s326
      %s329 = sshll.u32 [#allocation2], 4
      %s330 = int_to_ptr.vmem [resolvable:$true] %s329
      %332 = dma.vmem_to_hbm [thread:$0]  %s330, 256, %s6, [#allocation3]
    $region29: #{tpu_custom_call.1} parent=1 // pred_fallthru
      _
    // Predicated region
    $region30: #{tpu_custom_call.1} parent=1 // pred_check
      _
    $region31: #{tpu_custom_call.1} parent=1 // pred_check_branch
      %334 = sbr.rel (0) target = $region33
    $region32: #{tpu_custom_call.1} parent=1 // pred_region
      %335 = dma.done [#allocation3], 256
    $region33: #{tpu_custom_call.1} parent=1 // pred_fallthru
      _
    %336 = vsyncpa [#allocation3], 1

</llo_original>
